<compile_context>
chip_gen: v6e
topology: v6e:2x2x1
jax: 0.10.0
libtpu: 0.0.40
codegen_flags: <defaults>
</compile_context>

<pallas_src>
import numpy as np
import jax
import jax.numpy as jnp
from jax.experimental import pallas as pl
from jax.experimental.pallas import tpu as pltpu


# ---------------------------------------------------------------------------
# Degree-11 least-squares fit (in u = tanh(x/2), u in [-1, 1]) of
#     g(u) = tanh((1 + u) / 2) = tanh(sigmoid(x))
# Fit error ~1e-8; f32 Horner evaluation error ~1e-6 -> well inside 1e-5 tol.
# This replaces the second EUP tanh with ~11 VPU multiply-adds (free slack in
# a memory-bound kernel), keeping v7x bf16 at the HBM roofline.
_U_GRID = np.linspace(-1.0, 1.0, 8193)
_TANH_SIG_COEFFS = tuple(
    float(c) for c in np.polyfit(_U_GRID, np.tanh(0.5 * (_U_GRID + 1.0)), 11)
)


def _esh_kernel(x_ref, o_ref):
    x = x_ref[...].astype(jnp.float32)
    t = jnp.tanh(0.5 * x)                      # 1 EUP op; sigmoid(x) = 0.5*(t+1)
    p = jnp.float32(_TANH_SIG_COEFFS[0])       # VPU Horner for tanh(sigmoid(x))
    for c in _TANH_SIG_COEFFS[1:]:
        p = p * t + jnp.float32(c)
    o_ref[...] = (x * p).astype(o_ref.dtype)


_LANE_CANDIDATES = (4096, 2048, 1024, 512, 256, 128)


def _target_block_bytes():
    # ~4 MiB per operand block on v7x, ~2 MiB on v5e/v6e.  With double
    # buffering of input+output that is 16 MiB / 8 MiB -> inside every chip's
    # default scoped-VMEM budget, so no vmem_limit_bytes override is needed.
    try:
        kind = jax.devices()[0].device_kind.lower()
    except Exception:
        kind = ""
    if "v7" in kind or "7x" in kind:
        return 4 * 1024 * 1024
    return 2 * 1024 * 1024


def _sublane_tile(dtype):
    isz = jnp.dtype(dtype).itemsize
    return max(8, 32 // isz)  # 8 for 4-byte, 16 for 2-byte, 32 for 1-byte


def _esh_2d(x2d, block_bytes):
    """Run the Esh kernel over a lane-dense (rows, width) slab."""
    rows, width = x2d.shape
    dtype = x2d.dtype
    itemsize = jnp.dtype(dtype).itemsize
    sub = _sublane_tile(dtype)

    target_tr = max(sub, (block_bytes // (width * itemsize)) // sub * sub)
    tr = min(target_tr, rows)   # multiple of sub, or the full row extent

    # Guarantee a multi-step grid for tensors big enough to matter, so both
    # v7x TensorCores get work and the DMA pipeline has steps to overlap.
    total_bytes = rows * width * itemsize
    if total_bytes >= 16 * 1024 * 1024:
        min_steps = 8
    elif total_bytes >= 2 * 1024 * 1024:
        min_steps = 2
    else:
        min_steps = 1
    if min_steps > 1:
        cap = (rows // min_steps) // sub * sub
        if cap >= sub:
            tr = min(tr, cap)

    # tr is either a multiple of the sublane tile or the full row extent, and
    # width is a multiple of 128 -> the (8,128) BlockSpec rule always holds.
    # The ragged last row-block (rows % tr) is handled by the cdiv grid with
    # masked stores.
    grid = (pl.cdiv(rows, tr),)
    return pl.pallas_call(
        _esh_kernel,
        out_shape=jax.ShapeDtypeStruct((rows, width), dtype),
        grid=grid,
        in_specs=[pl.BlockSpec((tr, width), lambda i: (i, 0))],
        out_specs=pl.BlockSpec((tr, width), lambda i: (i, 0)),
        compiler_params=pltpu.CompilerParams(
            dimension_semantics=("parallel",)),
    )(x2d)


def _esh_impl(x):
    """Esh activation. Accepts any shape; returns same shape/dtype."""
    orig_shape = x.shape
    dtype = x.dtype
    total = x.size
    if total == 0:
        return x

    block_bytes = _target_block_bytes()
    x_flat = jnp.ravel(x)

    # Widest lane-dense width that divides the flat length -> zero extra
    # passes for the common (conv-activation) case.
    width = None
    for w in _LANE_CANDIDATES:
        if total % w == 0:
            width = w
            break

    if width is not None:
        out = _esh_2d(x_flat.reshape(total // width, width), block_bytes)
        return out.reshape(orig_shape)

    # Ragged total: run the divisible prefix through the kernel and the tiny
    # (<width) tail in plain jnp -- no full-tensor pad or output-slice copies.
    width = next((w for w in _LANE_CANDIDATES if total >= w), None)
    if width is None:
        # Fewer than 128 elements: a kernel launch is not worth it.
        xf = x_flat.astype(jnp.float32)
        out = (xf * jnp.tanh(jax.nn.sigmoid(xf))).astype(dtype)
        return out.reshape(orig_shape)

    main = (total // width) * width
    head = x_flat[:main].reshape(main // width, width)
    head_out = _esh_2d(head, block_bytes).reshape(-1)
    tail = x_flat[main:].astype(jnp.float32)
    tail_out = (tail * jnp.tanh(jax.nn.sigmoid(tail))).astype(dtype)
    return jnp.concatenate([head_out, tail_out]).reshape(orig_shape)


esh = jax.jit(_esh_impl)


def _esh_ref(x):
    xf = x.astype(jnp.float32)
    return xf * jnp.tanh(jax.nn.sigmoid(xf))


if __name__ == "__main__":
    key = jax.random.PRNGKey(0)

    # Main check: NCHW shape consistent with the module's UNet usage.
    x = jax.random.normal(key, (2, 4, 16, 16), dtype=jnp.float32)
    y = esh(x)
    jax.block_until_ready(y)
    assert y.shape == x.shape and y.dtype == x.dtype
    assert jnp.allclose(y, _esh_ref(x), atol=1e-5, rtol=1e-5)

    # Slightly larger divisible check (multi-sublane blocks).
    k1 = jax.random.PRNGKey(1)
    x1 = jax.random.normal(k1, (4, 8, 32, 32), dtype=jnp.float32)
    y1 = esh(x1)
    jax.block_until_ready(y1)
    assert jnp.allclose(y1, _esh_ref(x1), atol=1e-5, rtol=1e-5)

    # Tiny ragged size (pure-jnp fallback path, <128 elements).
    k2 = jax.random.PRNGKey(2)
    xr = jax.random.normal(k2, (3, 5, 7), dtype=jnp.float32)
    yr = esh(xr)
    jax.block_until_ready(yr)
    assert yr.shape == xr.shape and yr.dtype == xr.dtype
    assert jnp.allclose(yr, _esh_ref(xr), atol=1e-5, rtol=1e-5)

    # Ragged size exercising the kernel-prefix + jnp-tail path.
    k3 = jax.random.PRNGKey(3)
    xg = jax.random.normal(k3, (5, 7, 33), dtype=jnp.float32)
    yg = esh(xg)
    jax.block_until_ready(yg)
    assert yg.shape == xg.shape and yg.dtype == xg.dtype
    assert jnp.allclose(yg, _esh_ref(xg), atol=1e-5, rtol=1e-5)

    # bf16 check (I/O bf16, compute f32 in-kernel).
    xb = x.astype(jnp.bfloat16)
    yb = esh(xb)
    jax.block_until_ready(yb)
    assert yb.shape == xb.shape and yb.dtype == xb.dtype
    assert jnp.allclose(yb.astype(jnp.float32),
                        _esh_ref(xb),
                        atol=2e-2, rtol=2e-2)

    print("KERNEL_OK")
</pallas_src>

<mosaic_0001>
module attributes {stable_mosaic.version = 11 : i64} {
  func.func @_esh_kernel(%arg0: i32, %arg1: memref<1x2048xf32, #tpu.memory_space<vmem>>, %arg2: memref<1x2048xf32, #tpu.memory_space<vmem>>) attributes {dimension_semantics = [#tpu.dimension_semantics<parallel>], iteration_bounds = array<i64: 1>, scalar_prefetch = 0 : i64, scratch_operands = 0 : i64, tpu.core_type = #tpu.core_type<tc>, window_params = [{transform_indices = @transform_0, window_bounds = array<i64: 1, 2048>}, {transform_indices = @transform_1, window_bounds = array<i64: 1, 2048>}]} {
    %c0 = arith.constant 0 : index
    %c0_0 = arith.constant 0 : index
    %0 = vector.load %arg1[%c0, %c0_0] : memref<1x2048xf32, #tpu.memory_space<vmem>>, vector<1x2048xf32>
    %cst = arith.constant 5.000000e-01 : f32
    %1 = vector.broadcast %cst : f32 to vector<1x2048xf32>
    %2 = arith.mulf %1, %0 : vector<1x2048xf32>
    %3 = math.tanh %2 : vector<1x2048xf32>
    %cst_1 = arith.constant 1.77383981E-6 : f32
    %4 = vector.broadcast %cst_1 : f32 to vector<1x2048xf32>
    %5 = arith.mulf %4, %3 : vector<1x2048xf32>
    %cst_2 = arith.constant 6.7131981E-7 : f32
    %6 = vector.broadcast %cst_2 : f32 to vector<1x2048xf32>
    %7 = arith.addf %5, %6 : vector<1x2048xf32>
    %8 = arith.mulf %7, %3 : vector<1x2048xf32>
    %cst_3 = arith.constant -2.59692915E-5 : f32
    %9 = vector.broadcast %cst_3 : f32 to vector<1x2048xf32>
    %10 = arith.addf %8, %9 : vector<1x2048xf32>
    %11 = arith.mulf %10, %3 : vector<1x2048xf32>
    %cst_4 = arith.constant 3.25601068E-5 : f32
    %12 = vector.broadcast %cst_4 : f32 to vector<1x2048xf32>
    %13 = arith.addf %11, %12 : vector<1x2048xf32>
    %14 = arith.mulf %13, %3 : vector<1x2048xf32>
    %cst_5 = arith.constant 2.23251394E-4 : f32
    %15 = vector.broadcast %cst_5 : f32 to vector<1x2048xf32>
    %16 = arith.addf %14, %15 : vector<1x2048xf32>
    %17 = arith.mulf %16, %3 : vector<1x2048xf32>
    %cst_6 = arith.constant -7.879210e-04 : f32
    %18 = vector.broadcast %cst_6 : f32 to vector<1x2048xf32>
    %19 = arith.addf %17, %18 : vector<1x2048xf32>
    %20 = arith.mulf %19, %3 : vector<1x2048xf32>
    %cst_7 = arith.constant -8.50644603E-4 : f32
    %21 = vector.broadcast %cst_7 : f32 to vector<1x2048xf32>
    %22 = arith.addf %20, %21 : vector<1x2048xf32>
    %23 = arith.mulf %22, %3 : vector<1x2048xf32>
    %cst_8 = arith.constant 0.0102923689 : f32
    %24 = vector.broadcast %cst_8 : f32 to vector<1x2048xf32>
    %25 = arith.addf %23, %24 : vector<1x2048xf32>
    %26 = arith.mulf %25, %3 : vector<1x2048xf32>
    %cst_9 = arith.constant -1.177520e-02 : f32
    %27 = vector.broadcast %cst_9 : f32 to vector<1x2048xf32>
    %28 = arith.addf %26, %27 : vector<1x2048xf32>
    %29 = arith.mulf %28, %3 : vector<1x2048xf32>
    %cst_10 = arith.constant -0.0908577591 : f32
    %30 = vector.broadcast %cst_10 : f32 to vector<1x2048xf32>
    %31 = arith.addf %29, %30 : vector<1x2048xf32>
    %32 = arith.mulf %31, %3 : vector<1x2048xf32>
    %cst_11 = arith.constant 0.393223852 : f32
    %33 = vector.broadcast %cst_11 : f32 to vector<1x2048xf32>
    %34 = arith.addf %32, %33 : vector<1x2048xf32>
    %35 = arith.mulf %34, %3 : vector<1x2048xf32>
    %cst_12 = arith.constant 0.462117165 : f32
    %36 = vector.broadcast %cst_12 : f32 to vector<1x2048xf32>
    %37 = arith.addf %35, %36 : vector<1x2048xf32>
    %38 = arith.mulf %0, %37 : vector<1x2048xf32>
    %c0_13 = arith.constant 0 : index
    %c0_14 = arith.constant 0 : index
    %39 = vector.load %arg2[%c0_13, %c0_14] : memref<1x2048xf32, #tpu.memory_space<vmem>>, vector<1x2048xf32>
    tpu.vector_store %arg2[%c0_13, %c0_14], %38 {strides = array<i32>} : memref<1x2048xf32, #tpu.memory_space<vmem>>, vector<1x2048xf32>,
    return
  }
  func.func @transform_0(%arg0: i32) -> (i32, i32) {
    %c0_i32 = arith.constant 0 : i32
    %c0_i32_0 = arith.constant 0 : i32
    return %arg0, %c0_i32 : i32, i32
  }
  func.func @transform_1(%arg0: i32) -> (i32, i32) {
    %c0_i32 = arith.constant 0 : i32
    %c0_i32_0 = arith.constant 0 : i32
    return %arg0, %c0_i32 : i32, i32
  }
}

</mosaic_0001>

<llo_original>
// kernel: _esh_impl.1
$region0: #{_esh_impl.1}
  #allocation0 [shape = 'u32[]', space=smem, size = 0x4, offset = 0x4, fixed_abs, tag = 'smem constant byte address 0x4 - core index']
  #allocation1 [shape = 'u32[144,128]{1,0:T(1,128)}', space=vmem, size = 0x12000, scoped, tag = 'internal scratch']
  %s0 = inlined_call_operand.vmem [shape: f32[1,2048], index: 0, kind: input, shape index: {}]
  %s1 = inlined_call_operand.vmem [shape: f32[1,2048], index: 1, kind: output, shape index: {}]
  %s2 = sld [smem:[#allocation0]]
  $region14: #{_esh_impl.1} parent=0
    _
  %s4 = ssub.s32 1, %s2
  %s5 = scalar_select 0, %s4, %s2
  // Predicated region
  $region2: #{_esh_impl.1} parent=0 // pred_check
    _
  $region3: #{_esh_impl.1} parent=0 // pred_check_branch
    %7 = sbr.rel (0) target = $region5
  $region4: #{_esh_impl.1} parent=0 // pred_region
    _
  $region5: #{_esh_impl.1} parent=0 // pred_fallthru
    _
  %v8 = vld [vmem:[%s0] sm:$0xff]
  %v9 = vld [vmem:[%s0 + $0x8] sm:$0xff]
  %v10 = vmul.f32 %v8, 0.5
  %v11 = vmul.f32 %v9, 0.5
  %v12 = vtanh.pop %v10
  %v13 = vtanh.pop %v11
  %v14 = vmul.f32 %v12, 1.7738398e-06
  %v15 = vmul.f32 %v13, 1.7738398e-06
  %v16 = vadd.f32 %v14, 6.713198e-07
  %v17 = vadd.f32 %v15, 6.713198e-07
  %v18 = vmul.f32 %v16, %v12
  %v19 = vmul.f32 %v17, %v13
  %v20 = vadd.f32 %v18, -2.5969292e-05
  %v21 = vadd.f32 %v19, -2.5969292e-05
  %v22 = vmul.f32 %v20, %v12
  %v23 = vmul.f32 %v21, %v13
  %v24 = vadd.f32 %v22, 3.2560107e-05
  %v25 = vadd.f32 %v23, 3.2560107e-05
  %v26 = vmul.f32 %v24, %v12
  %v27 = vmul.f32 %v25, %v13
  %v28 = vadd.f32 %v26, 0.0002232514
  %v29 = vadd.f32 %v27, 0.0002232514
  %v30 = vmul.f32 %v28, %v12
  %v31 = vmul.f32 %v29, %v13
  %v32 = vadd.f32 %v30, -0.000787921
  %v33 = vadd.f32 %v31, -0.000787921
  %v34 = vmul.f32 %v32, %v12
  %v35 = vmul.f32 %v33, %v13
  %v36 = vadd.f32 %v34, -0.0008506446
  %v37 = vadd.f32 %v35, -0.0008506446
  %v38 = vmul.f32 %v36, %v12
  %v39 = vmul.f32 %v37, %v13
  %v40 = vadd.f32 %v38, 0.010292369
  %v41 = vadd.f32 %v39, 0.010292369
  %v42 = vmul.f32 %v40, %v12
  %v43 = vmul.f32 %v41, %v13
  %v44 = vadd.f32 %v42, -0.0117752
  %v45 = vadd.f32 %v43, -0.0117752
  %v46 = vmul.f32 %v44, %v12
  %v47 = vmul.f32 %v45, %v13
  %v48 = vadd.f32 %v46, -0.09085776
  %v49 = vadd.f32 %v47, -0.09085776
  %v50 = vmul.f32 %v48, %v12
  %v51 = vmul.f32 %v49, %v13
  %v52 = vadd.f32 %v50, 0.39322385
  %v53 = vadd.f32 %v51, 0.39322385
  %v54 = vmul.f32 %v52, %v12
  %v55 = vmul.f32 %v53, %v13
  %v56 = vadd.f32 %v54, 0.46211717
  %v57 = vadd.f32 %v55, 0.46211717
  %v58 = vmul.f32 %v8, %v56
  %v59 = vmul.f32 %v9, %v57
  %60 = vst [vmem:[%s1] sm:$0xff] %v58
  %61 = vst [vmem:[%s1 + $0x8] sm:$0xff] %v59
  // Predicated region
  $region6: #{_esh_impl.1} parent=0 // pred_check
    _
  $region7: #{_esh_impl.1} parent=0 // pred_check_branch
    %63 = sbr.rel (0) target = $region9
  $region8: #{_esh_impl.1} parent=0 // pred_region
    _
  $region9: #{_esh_impl.1} parent=0 // pred_fallthru
    _
  // Predicated region
  $region10: #{_esh_impl.1} parent=0 // pred_check
    _
  $region11: #{_esh_impl.1} parent=0 // pred_check_branch
    %65 = sbr.rel (0) target = $region13
  $region12: #{_esh_impl.1} parent=0 // pred_region
    _
  $region13: #{_esh_impl.1} parent=0 // pred_fallthru
    _

</llo_original>
